<compile_context>
chip_gen: v5e
topology: v5e:2x2
jax: 0.10.0
libtpu: 0.0.40
codegen_flags: <defaults>
</compile_context>

<pallas_src>
import numpy as np

import jax
import jax.numpy as jnp
from jax.experimental import pallas as pl
from jax.experimental.pallas import tpu as pltpu

L_IN = 60          # input signal length (fixed by fc1 = 16*13)
L1 = 60            # conv1 output length (padding=2)
P1L = 30           # after pool1
L2 = 26            # conv2 output length (valid)
P2L = 13           # after pool2
K = 5              # conv kernel size

C1W = 6 * L1       # 360  (channel-major flatten of conv1 output)
C2W = 16 * L2      # 416  (channel-major flatten of conv2 output)
NEG = -1e30        # "minus infinity" bias for padded softmax lanes

# Consolidated-bias layout: each segment starts at a 128-lane boundary.
B1_OFF = 0         # conv1 bias, width 360 (segment 384)
B2_OFF = 384       # conv2 bias, width 416 (segment 512)
F1_OFF = 896       # fc1 bias,   width 120 (segment 128)
F2_OFF = 1024      # fc2 bias,   width  84 (segment 128)
F3_OFF = 1152      # fc3 bias,   width 128 (segment 128, pad cols = -1e30)
BIAS_TOTAL = 1280


def simple_cnn_kernel(x_ref, w1_ref, w2_ref, wf1_ref, wf2_ref, wf3_ref, b_ref,
                      out_ref):
    """One TB-row batch tile per grid step; all layers are MXU matmuls."""
    x = x_ref[...]                                                      # (TB, 60)

    # conv1 (padding folded into the band matrix) + sigmoid
    y1 = jax.nn.sigmoid(
        jnp.dot(x, w1_ref[...], preferred_element_type=jnp.float32)
        + b_ref[:, B1_OFF:B1_OFF + C1W])                                # (TB, 360)

    # pool1 ∘ conv2 (composed into one matrix) + sigmoid
    y2 = jax.nn.sigmoid(
        jnp.dot(y1, w2_ref[...], preferred_element_type=jnp.float32)
        + b_ref[:, B2_OFF:B2_OFF + C2W])                                # (TB, 416)

    # pool2 ∘ flatten ∘ fc1 (composed) + sigmoid
    h1 = jax.nn.sigmoid(
        jnp.dot(y2, wf1_ref[...], preferred_element_type=jnp.float32)
        + b_ref[:, F1_OFF:F1_OFF + 120])                                # (TB, 120)

    # fc2 + sigmoid
    h2 = jax.nn.sigmoid(
        jnp.dot(h1, wf2_ref[...], preferred_element_type=jnp.float32)
        + b_ref[:, F2_OFF:F2_OFF + 84])                                 # (TB, 84)

    # fc3 (lane-padded to 128; pad columns carry bias -1e30) + softmax
    logits = (jnp.dot(h2, wf3_ref[...], preferred_element_type=jnp.float32)
              + b_ref[:, F3_OFF:F3_OFF + 128])                          # (TB, 128)
    m = jnp.max(logits, axis=1, keepdims=True)
    e = jnp.exp(logits - m)                                             # pad cols -> 0
    out_ref[...] = e / jnp.sum(e, axis=1, keepdims=True)


# ---------------------------------------------------------------------------
# Trace-time weight folding helpers (static structure in numpy, values in jnp).
# ---------------------------------------------------------------------------

def _pool_matrix_np(n_in, n_out):
    """M (n_in, n_out) s.t. x @ M == AvgPool1d(k=2, s=2)(x)."""
    m = np.zeros((n_in, n_out), np.float32)
    i = np.arange(n_out)
    m[2 * i, i] = 0.5
    m[2 * i + 1, i] = 0.5
    return m


def _block_diag_np(m, reps):
    n_in, n_out = m.shape
    out = np.zeros((reps * n_in, reps * n_out), np.float32)
    for r in range(reps):
        out[r * n_in:(r + 1) * n_in, r * n_out:(r + 1) * n_out] = m
    return out


def _round_up(n, m):
    return ((n + m - 1) // m) * m


def _bias_segment(v, width, pad_value=0.0):
    return jnp.full((width,), pad_value, jnp.float32).at[:v.shape[0]].set(
        v.astype(jnp.float32))


def init_params(key):
    """Deterministic parameter init matching the PyTorch module's shapes."""
    ks = jax.random.split(key, 10)

    def u(k, shape, fan_in):
        bound = 1.0 / jnp.sqrt(fan_in)
        return jax.random.uniform(k, shape, jnp.float32, -bound, bound)

    return dict(
        conv1_w=u(ks[0], (6, 1, 5), 1 * 5),
        conv1_b=u(ks[1], (6,), 1 * 5),
        conv2_w=u(ks[2], (16, 6, 5), 6 * 5),
        conv2_b=u(ks[3], (16,), 6 * 5),
        fc1_w=u(ks[4], (120, 208), 208),
        fc1_b=u(ks[5], (120,), 208),
        fc2_w=u(ks[6], (84, 120), 120),
        fc2_b=u(ks[7], (84,), 120),
        fc3_w=u(ks[8], (10, 84), 84),
        fc3_b=u(ks[9], (10,), 84),
    )


@jax.jit
def simple_cnn_forward(x, params):
    """x: (B, 60) float32 -> (B, 10) softmax probabilities."""
    B = x.shape[0]
    TB = min(256, _round_up(B, 8))          # batch tile: multiple of 8 sublanes
    B_pad = _round_up(B, TB)
    xb = jnp.pad(x.astype(jnp.float32), ((0, B_pad - B), (0, 0)))       # (B_pad, 60)

    # ---- conv1 -> dense band matrix (60, 360); padding=2 folded in -------
    w1 = params["conv1_w"][:, 0, :]                                     # (6, 5)
    S1 = np.zeros((K, L_IN, L1), np.float32)                            # shift selectors
    for k in range(K):
        for l in range(L1):
            i = l + k - 2
            if 0 <= i < L_IN:
                S1[k, i, l] = 1.0
    W1_band = jnp.einsum('ck,kil->icl', w1, jnp.asarray(S1)).reshape(L_IN, C1W)
    b1_rep = jnp.repeat(params["conv1_b"], L1)                          # (360,)

    # ---- pool1 ∘ conv2 -> one (360, 416) matrix ---------------------------
    T2 = np.zeros((K, P1L, L2), np.float32)
    for k in range(K):
        for l in range(L2):
            T2[k, l + k, l] = 1.0
    W2_band = jnp.einsum('ock,kjl->cjol', params["conv2_w"],
                         jnp.asarray(T2)).reshape(6 * P1L, C2W)          # (180, 416)
    P1_big = jnp.asarray(_block_diag_np(_pool_matrix_np(L1, P1L), 6))    # (360, 180)
    W2_full = P1_big @ W2_band                                           # (360, 416)
    b2_rep = jnp.repeat(params["conv2_b"], L2)                           # (416,)

    # ---- pool2 ∘ flatten ∘ fc1 -> one (416, 120) matrix -------------------
    P2_big = jnp.asarray(_block_diag_np(_pool_matrix_np(L2, P2L), 16))   # (416, 208)
    Wfc1_full = P2_big @ params["fc1_w"].T                               # (416, 120)

    W2t = params["fc2_w"].T                                              # (120, 84)
    # fc3 padded to 128 output lanes (zero weights on pad columns)
    W3t_pad = jnp.zeros((84, 128), jnp.float32).at[:, :10].set(params["fc3_w"].T)

    # ---- consolidated, lane-aligned bias operand (1, 1280) ----------------
    biases = jnp.concatenate([
        _bias_segment(b1_rep, 384),
        _bias_segment(b2_rep, 512),
        _bias_segment(params["fc1_b"], 128),
        _bias_segment(params["fc2_b"], 128),
        _bias_segment(params["fc3_b"], 128, pad_value=NEG),
    ]).reshape(1, BIAS_TOTAL)

    const = lambda shape: pl.BlockSpec(shape, lambda i: (0,) * len(shape))

    out = pl.pallas_call(
        simple_cnn_kernel,
        out_shape=jax.ShapeDtypeStruct((B_pad, 128), jnp.float32),
        grid_spec=pltpu.PrefetchScalarGridSpec(
            num_scalar_prefetch=0,
            grid=(B_pad // TB,),
            in_specs=[
                pl.BlockSpec((TB, L_IN), lambda i: (i, 0)),   # x batch tile
                const((L_IN, C1W)),                           # conv1 band        (60, 360)
                const((C1W, C2W)),                            # pool1∘conv2       (360, 416)
                const((C2W, 120)),                            # pool2∘flat∘fc1    (416, 120)
                const((120, 84)),                             # fc2^T
                const((84, 128)),                             # fc3^T lane-padded
                const((1, BIAS_TOTAL)),                       # all biases
            ],
            out_specs=pl.BlockSpec((TB, 128), lambda i: (i, 0)),
        ),
        compiler_params=pltpu.CompilerParams(dimension_semantics=("parallel",)),
    )(xb, W1_band, W2_full, Wfc1_full, W2t, W3t_pad, biases)

    return out[:B, :10]


def reference_forward(x, params):
    """Pure-JAX reference reproducing the PyTorch forward (for correctness check)."""
    x = x.astype(jnp.float32)
    xpad = jnp.pad(x, ((0, 0), (2, 2)))                                 # (B, 64)
    shifts1 = jnp.stack([xpad[:, k:k + L1] for k in range(K)], axis=1)  # (B, 5, 60)
    y1 = jnp.einsum('ck,bkl->bcl', params["conv1_w"][:, 0, :], shifts1)
    y1 = jax.nn.sigmoid(y1 + params["conv1_b"][None, :, None])
    p1 = y1.reshape(-1, 6, P1L, 2).mean(-1)                             # (B, 6, 30)
    shifts2 = jnp.stack([p1[:, :, k:k + L2] for k in range(K)], axis=2)  # (B, 6, 5, 26)
    y2 = jnp.einsum('ock,bckl->bol', params["conv2_w"], shifts2)
    y2 = jax.nn.sigmoid(y2 + params["conv2_b"][None, :, None])
    p2 = y2.reshape(-1, 16, P2L, 2).mean(-1)                            # (B, 16, 13)
    flat = p2.reshape(-1, 16 * 13)                                      # (B, 208)
    h1 = jax.nn.sigmoid(flat @ params["fc1_w"].T + params["fc1_b"])
    h2 = jax.nn.sigmoid(h1 @ params["fc2_w"].T + params["fc2_b"])
    logits = h2 @ params["fc3_w"].T + params["fc3_b"]
    return jax.nn.softmax(logits, axis=1)


if __name__ == "__main__":
    key = jax.random.PRNGKey(0)
    k_params, k_x = jax.random.split(key)
    params = init_params(k_params)

    B = 4
    x = jax.random.normal(k_x, (B, L_IN), jnp.float32)   # (batch, signal length 60)

    out = jax.block_until_ready(simple_cnn_forward(x, params))
    ref = jax.block_until_ready(reference_forward(x, params))

    assert out.shape == (B, 10)
    assert jnp.allclose(jnp.sum(out, axis=1), 1.0, atol=1e-5)
    assert jnp.allclose(out, ref, rtol=1e-3, atol=1e-5), (out, ref)

    print("KERNEL_OK")
</pallas_src>

<mosaic_0001>
module attributes {stable_mosaic.version = 11 : i64} {
  func.func @simple_cnn_kernel(%arg0: i32, %arg1: memref<8x60xf32, #tpu.memory_space<vmem>>, %arg2: memref<60x360xf32, #tpu.memory_space<vmem>>, %arg3: memref<360x416xf32, #tpu.memory_space<vmem>>, %arg4: memref<416x120xf32, #tpu.memory_space<vmem>>, %arg5: memref<120x84xf32, #tpu.memory_space<vmem>>, %arg6: memref<84x128xf32, #tpu.memory_space<vmem>>, %arg7: memref<1x1280xf32, #tpu.memory_space<vmem>>, %arg8: memref<8x128xf32, #tpu.memory_space<vmem>>) attributes {dimension_semantics = [#tpu.dimension_semantics<parallel>], iteration_bounds = array<i64: 1>, scalar_prefetch = 0 : i64, scratch_operands = 0 : i64, tpu.core_type = #tpu.core_type<tc>, window_params = [{transform_indices = @transform_0, window_bounds = array<i64: 8, 60>}, {pipeline_mode = #tpu.pipeline_mode<synchronous>, transform_indices = @transform_1, window_bounds = array<i64: 60, 360>}, {pipeline_mode = #tpu.pipeline_mode<synchronous>, transform_indices = @transform_2, window_bounds = array<i64: 360, 416>}, {pipeline_mode = #tpu.pipeline_mode<synchronous>, transform_indices = @transform_3, window_bounds = array<i64: 416, 120>}, {pipeline_mode = #tpu.pipeline_mode<synchronous>, transform_indices = @transform_4, window_bounds = array<i64: 120, 84>}, {pipeline_mode = #tpu.pipeline_mode<synchronous>, transform_indices = @transform_5, window_bounds = array<i64: 84, 128>}, {pipeline_mode = #tpu.pipeline_mode<synchronous>, transform_indices = @transform_6, window_bounds = array<i64: 1, 1280>}, {transform_indices = @transform_7, window_bounds = array<i64: 8, 128>}]} {
    %c0 = arith.constant 0 : index
    %c0_0 = arith.constant 0 : index
    %0 = vector.load %arg1[%c0, %c0_0] : memref<8x60xf32, #tpu.memory_space<vmem>>, vector<8x60xf32>
    %c0_1 = arith.constant 0 : index
    %c0_2 = arith.constant 0 : index
    %1 = vector.load %arg2[%c0_1, %c0_2] : memref<60x360xf32, #tpu.memory_space<vmem>>, vector<60x360xf32>
    %cst = arith.constant dense<0.000000e+00> : vector<8x360xf32>
    %2 = tpu.matmul %0, %1, %cst {dimension_numbers = #tpu.dot_dimension_numbers<[1], [0], [0], [1], [0, 0, 1, 1], [], []>} : vector<8x60xf32>, vector<60x360xf32>, vector<8x360xf32> -> vector<8x360xf32>
    %c0_3 = arith.constant 0 : index
    %c0_4 = arith.constant 0 : index
    %3 = vector.load %arg7[%c0_3, %c0_4] : memref<1x1280xf32, #tpu.memory_space<vmem>>, vector<1x360xf32>
    %4 = vector.broadcast %3 : vector<1x360xf32> to vector<8x360xf32>
    %5 = arith.addf %2, %4 : vector<8x360xf32>
    %6 = arith.negf %5 : vector<8x360xf32>
    %7 = math.exp %6 : vector<8x360xf32>
    %cst_5 = arith.constant 1.000000e+00 : f32
    %8 = vector.broadcast %cst_5 : f32 to vector<8x360xf32>
    %9 = arith.addf %8, %7 : vector<8x360xf32>
    %10 = arith.divf %8, %9 : vector<8x360xf32>
    %c0_6 = arith.constant 0 : index
    %c0_7 = arith.constant 0 : index
    %11 = vector.load %arg3[%c0_6, %c0_7] : memref<360x416xf32, #tpu.memory_space<vmem>>, vector<360x416xf32>
    %cst_8 = arith.constant dense<0.000000e+00> : vector<8x416xf32>
    %12 = tpu.matmul %10, %11, %cst_8 {dimension_numbers = #tpu.dot_dimension_numbers<[1], [0], [0], [1], [0, 0, 1, 1], [], []>} : vector<8x360xf32>, vector<360x416xf32>, vector<8x416xf32> -> vector<8x416xf32>
    %c0_9 = arith.constant 0 : index
    %c384 = arith.constant 384 : index
    %13 = vector.load %arg7[%c0_9, %c384] : memref<1x1280xf32, #tpu.memory_space<vmem>>, vector<1x416xf32>
    %14 = vector.broadcast %13 : vector<1x416xf32> to vector<8x416xf32>
    %15 = arith.addf %12, %14 : vector<8x416xf32>
    %16 = arith.negf %15 : vector<8x416xf32>
    %17 = math.exp %16 : vector<8x416xf32>
    %cst_10 = arith.constant 1.000000e+00 : f32
    %18 = vector.broadcast %cst_10 : f32 to vector<8x416xf32>
    %19 = arith.addf %18, %17 : vector<8x416xf32>
    %20 = arith.divf %18, %19 : vector<8x416xf32>
    %c0_11 = arith.constant 0 : index
    %c0_12 = arith.constant 0 : index
    %21 = vector.load %arg4[%c0_11, %c0_12] : memref<416x120xf32, #tpu.memory_space<vmem>>, vector<416x120xf32>
    %cst_13 = arith.constant dense<0.000000e+00> : vector<8x120xf32>
    %22 = tpu.matmul %20, %21, %cst_13 {dimension_numbers = #tpu.dot_dimension_numbers<[1], [0], [0], [1], [0, 0, 1, 1], [], []>} : vector<8x416xf32>, vector<416x120xf32>, vector<8x120xf32> -> vector<8x120xf32>
    %c0_14 = arith.constant 0 : index
    %c896 = arith.constant 896 : index
    %23 = vector.load %arg7[%c0_14, %c896] : memref<1x1280xf32, #tpu.memory_space<vmem>>, vector<1x120xf32>
    %24 = vector.broadcast %23 : vector<1x120xf32> to vector<8x120xf32>
    %25 = arith.addf %22, %24 : vector<8x120xf32>
    %26 = arith.negf %25 : vector<8x120xf32>
    %27 = math.exp %26 : vector<8x120xf32>
    %cst_15 = arith.constant 1.000000e+00 : f32
    %28 = vector.broadcast %cst_15 : f32 to vector<8x120xf32>
    %29 = arith.addf %28, %27 : vector<8x120xf32>
    %30 = arith.divf %28, %29 : vector<8x120xf32>
    %c0_16 = arith.constant 0 : index
    %c0_17 = arith.constant 0 : index
    %31 = vector.load %arg5[%c0_16, %c0_17] : memref<120x84xf32, #tpu.memory_space<vmem>>, vector<120x84xf32>
    %cst_18 = arith.constant dense<0.000000e+00> : vector<8x84xf32>
    %32 = tpu.matmul %30, %31, %cst_18 {dimension_numbers = #tpu.dot_dimension_numbers<[1], [0], [0], [1], [0, 0, 1, 1], [], []>} : vector<8x120xf32>, vector<120x84xf32>, vector<8x84xf32> -> vector<8x84xf32>
    %c0_19 = arith.constant 0 : index
    %c1024 = arith.constant 1024 : index
    %33 = vector.load %arg7[%c0_19, %c1024] : memref<1x1280xf32, #tpu.memory_space<vmem>>, vector<1x84xf32>
    %34 = vector.broadcast %33 : vector<1x84xf32> to vector<8x84xf32>
    %35 = arith.addf %32, %34 : vector<8x84xf32>
    %36 = arith.negf %35 : vector<8x84xf32>
    %37 = math.exp %36 : vector<8x84xf32>
    %cst_20 = arith.constant 1.000000e+00 : f32
    %38 = vector.broadcast %cst_20 : f32 to vector<8x84xf32>
    %39 = arith.addf %38, %37 : vector<8x84xf32>
    %40 = arith.divf %38, %39 : vector<8x84xf32>
    %c0_21 = arith.constant 0 : index
    %c0_22 = arith.constant 0 : index
    %41 = vector.load %arg6[%c0_21, %c0_22] : memref<84x128xf32, #tpu.memory_space<vmem>>, vector<84x128xf32>
    %cst_23 = arith.constant dense<0.000000e+00> : vector<8x128xf32>
    %42 = tpu.matmul %40, %41, %cst_23 {dimension_numbers = #tpu.dot_dimension_numbers<[1], [0], [0], [1], [0, 0, 1, 1], [], []>} : vector<8x84xf32>, vector<84x128xf32>, vector<8x128xf32> -> vector<8x128xf32>
    %c0_24 = arith.constant 0 : index
    %c1152 = arith.constant 1152 : index
    %43 = vector.load %arg7[%c0_24, %c1152] : memref<1x1280xf32, #tpu.memory_space<vmem>>, vector<1x128xf32>
    %44 = vector.broadcast %43 : vector<1x128xf32> to vector<8x128xf32>
    %45 = arith.addf %42, %44 : vector<8x128xf32>
    %cst_25 = arith.constant dense<0xFF800000> : vector<8xf32>
    %46 = vector.multi_reduction <maximumf>, %45, %cst_25 [1] : vector<8x128xf32> to vector<8xf32>
    %47 = vector.shape_cast %46 : vector<8xf32> to vector<8x1xf32>
    %48 = vector.broadcast %47 : vector<8x1xf32> to vector<8x128xf32>
    %49 = arith.subf %45, %48 : vector<8x128xf32>
    %50 = math.exp %49 : vector<8x128xf32>
    %cst_26 = arith.constant dense<0.000000e+00> : vector<8xf32>
    %51 = vector.multi_reduction <add>, %50, %cst_26 [1] : vector<8x128xf32> to vector<8xf32>
    %52 = vector.shape_cast %51 : vector<8xf32> to vector<8x1xf32>
    %53 = vector.broadcast %52 : vector<8x1xf32> to vector<8x128xf32>
    %54 = arith.divf %50, %53 : vector<8x128xf32>
    %c0_27 = arith.constant 0 : index
    %c0_28 = arith.constant 0 : index
    %55 = vector.load %arg8[%c0_27, %c0_28] : memref<8x128xf32, #tpu.memory_space<vmem>>, vector<8x128xf32>
    tpu.vector_store %arg8[%c0_27, %c0_28], %54 {strides = array<i32>} : memref<8x128xf32, #tpu.memory_space<vmem>>, vector<8x128xf32>,
    return
  }
  func.func @transform_0(%arg0: i32) -> (i32, i32) {
    %c0_i32 = arith.constant 0 : i32
    %c0_i32_0 = arith.constant 0 : i32
    return %arg0, %c0_i32 : i32, i32
  }
  func.func @transform_1(%arg0: i32) -> (i32, i32) {
    %c0_i32 = arith.constant 0 : i32
    %c0_i32_0 = arith.constant 0 : i32
    %c0_i32_1 = arith.constant 0 : i32
    return %c0_i32, %c0_i32_0 : i32, i32
  }
  func.func @transform_2(%arg0: i32) -> (i32, i32) {
    %c0_i32 = arith.constant 0 : i32
    %c0_i32_0 = arith.constant 0 : i32
    %c0_i32_1 = arith.constant 0 : i32
    return %c0_i32, %c0_i32_0 : i32, i32
  }
  func.func @transform_3(%arg0: i32) -> (i32, i32) {
    %c0_i32 = arith.constant 0 : i32
    %c0_i32_0 = arith.constant 0 : i32
    %c0_i32_1 = arith.constant 0 : i32
    return %c0_i32, %c0_i32_0 : i32, i32
  }
  func.func @transform_4(%arg0: i32) -> (i32, i32) {
    %c0_i32 = arith.constant 0 : i32
    %c0_i32_0 = arith.constant 0 : i32
    %c0_i32_1 = arith.constant 0 : i32
    return %c0_i32, %c0_i32_0 : i32, i32
  }
  func.func @transform_5(%arg0: i32) -> (i32, i32) {
    %c0_i32 = arith.constant 0 : i32
    %c0_i32_0 = arith.constant 0 : i32
    %c0_i32_1 = arith.constant 0 : i32
    return %c0_i32, %c0_i32_0 : i32, i32
  }
  func.func @transform_6(%arg0: i32) -> (i32, i32) {
    %c0_i32 = arith.constant 0 : i32
    %c0_i32_0 = arith.constant 0 : i32
    %c0_i32_1 = arith.constant 0 : i32
    return %c0_i32, %c0_i32_0 : i32, i32
  }
  func.func @transform_7(%arg0: i32) -> (i32, i32) {
    %c0_i32 = arith.constant 0 : i32
    %c0_i32_0 = arith.constant 0 : i32
    return %arg0, %c0_i32 : i32, i32
  }
}

</mosaic_0001>

<llo_original>
// kernel: custom-call
$region0: #{custom-call}
  %s0 = inlined_call_operand.vmem [shape: f32[1280], index: 0, kind: output, shape index: {}]

// kernel: simple_cnn_forward.1
$region0: #{simple_cnn_forward.1}
  #allocation0 [shape = 'u32[]', space=smem, size = 0x4, offset = 0x4, fixed_abs, tag = 'smem constant byte address 0x4 - core index']
  #allocation1 [shape = 'u32[72,128]{1,0:T(1,128)}', space=vmem, size = 0x9000, scoped, tag = 'internal scratch']
  %s0 = inlined_call_operand.vmem [shape: f32[8,60], index: 0, kind: input, shape index: {}]
  %s1 = inlined_call_operand.vmem [shape: f32[60,360], index: 1, kind: input, shape index: {}]
  %s2 = inlined_call_operand.vmem [shape: f32[360,416], index: 2, kind: input, shape index: {}]
  %s3 = inlined_call_operand.vmem [shape: f32[416,120], index: 3, kind: input, shape index: {}]
  %s4 = inlined_call_operand.vmem [shape: f32[120,84], index: 4, kind: input, shape index: {}]
  %s5 = inlined_call_operand.vmem [shape: f32[84,128], index: 5, kind: input, shape index: {}]
  %s6 = inlined_call_operand.vmem [shape: f32[1,1280], index: 6, kind: input, shape index: {}]
  %s7 = inlined_call_operand.vmem [shape: f32[8,128], index: 7, kind: output, shape index: {}]
  %s8 = sld [smem:[#allocation0]]
  $region38: #{simple_cnn_forward.1} parent=0
    _
  %s10 = ssub.s32 1, %s8
  %s11 = scalar_select 0, %s10, %s8
  // Predicated region
  $region2: #{simple_cnn_forward.1} parent=0 // pred_check
    _
  $region3: #{simple_cnn_forward.1} parent=0 // pred_check_branch
    %13 = sbr.rel (0) target = $region5
  $region4: #{simple_cnn_forward.1} parent=0 // pred_region
    _
  $region5: #{simple_cnn_forward.1} parent=0 // pred_fallthru
    _
  // Predicated region
  $region6: #{simple_cnn_forward.1} parent=0 // pred_check
    _
  $region7: #{simple_cnn_forward.1} parent=0 // pred_check_branch
    %15 = sbr.rel (0) target = $region9
  $region8: #{simple_cnn_forward.1} parent=0 // pred_region
    _
  $region9: #{simple_cnn_forward.1} parent=0 // pred_fallthru
    _
  // Predicated region
  $region10: #{simple_cnn_forward.1} parent=0 // pred_check
    _
  $region11: #{simple_cnn_forward.1} parent=0 // pred_check_branch
    %17 = sbr.rel (0) target = $region13
  $region12: #{simple_cnn_forward.1} parent=0 // pred_region
    _
  $region13: #{simple_cnn_forward.1} parent=0 // pred_fallthru
    _
  // Predicated region
  $region14: #{simple_cnn_forward.1} parent=0 // pred_check
    _
  $region15: #{simple_cnn_forward.1} parent=0 // pred_check_branch
    %19 = sbr.rel (0) target = $region17
  $region16: #{simple_cnn_forward.1} parent=0 // pred_region
    _
  $region17: #{simple_cnn_forward.1} parent=0 // pred_fallthru
    _
  // Predicated region
  $region18: #{simple_cnn_forward.1} parent=0 // pred_check
    _
  $region19: #{simple_cnn_forward.1} parent=0 // pred_check_branch
    %21 = sbr.rel (0) target = $region21
  $region20: #{simple_cnn_forward.1} parent=0 // pred_region
    _
  $region21: #{simple_cnn_forward.1} parent=0 // pred_fallthru
    _
  // Predicated region
  $region22: #{simple_cnn_forward.1} parent=0 // pred_check
    _
  $region23: #{simple_cnn_forward.1} parent=0 // pred_check_branch
    %23 = sbr.rel (0) target = $region25
  $region24: #{simple_cnn_forward.1} parent=0 // pred_region
    _
  $region25: #{simple_cnn_forward.1} parent=0 // pred_fallthru
    _
  // Predicated region
  $region26: #{simple_cnn_forward.1} parent=0 // pred_check
    _
  $region27: #{simple_cnn_forward.1} parent=0 // pred_check_branch
    %25 = sbr.rel (0) target = $region29
  $region28: #{simple_cnn_forward.1} parent=0 // pred_region
    _
  $region29: #{simple_cnn_forward.1} parent=0 // pred_fallthru
    _
  %v26 = vld [vmem:[%s0] sm:$0xff]
  %v27 = vld [vmem:[%s1] sm:$0xff]
  %v28 = vld [vmem:[%s1 + $0x8] sm:$0xff]
  %v29 = vld [vmem:[%s1 + $0x10] sm:$0xff]
  %v30 = vld [vmem:[%s1 + $0x18] sm:$0xff]
  %v31 = vld [vmem:[%s1 + $0x20] sm:$0xff]
  %v32 = vld [vmem:[%s1 + $0x28] sm:$0xff]
  %v33 = vld [vmem:[%s1 + $0x30] sm:$0xff]
  %v34 = vld [vmem:[%s1 + $0x38] sm:$0xff]
  %v35 = vld [vmem:[%s1 + $0x40] sm:$0xff]
  %v36 = vld [vmem:[%s1 + $0x48] sm:$0xff]
  %v37 = vld [vmem:[%s1 + $0x50] sm:$0xff]
  %v38 = vld [vmem:[%s1 + $0x58] sm:$0xff]
  %v39 = vld [vmem:[%s1 + $0x60] sm:$0xff]
  %v40 = vld [vmem:[%s1 + $0x68] sm:$0xff]
  %v41 = vld [vmem:[%s1 + $0x70] sm:$0xff]
  %v42 = vld [vmem:[%s1 + $0x78] sm:$0xff]
  %v43 = vld [vmem:[%s1 + $0x80] sm:$0xff]
  %v44 = vld [vmem:[%s1 + $0x88] sm:$0xff]
  %v45 = vld [vmem:[%s1 + $0x90] sm:$0xff]
  %v46 = vld [vmem:[%s1 + $0x98] sm:$0xff]
  %v47 = vld [vmem:[%s1 + $0xa0] sm:$0xff]
  %v48 = vld [vmem:[%s1 + $0xa8] sm:$0xf]
  %v49 = vld [vmem:[%s1 + $0xb0] sm:$0xf]
  %v50 = vld [vmem:[%s1 + $0xb8] sm:$0xf]
  %v51 = vld [vmem:[%s6] sm:$0x7]
  %v53 = vperm.slane %v51, 0
  %v54 = vperm.slane %v51, 1
  %v55 = vperm.slane %v51, 2
  %vm59 = vcmask 490496
  %v61 = vsel %vm59, %v26, 0
  %vm63 = vcmask 1043456
  %v65 = vsel %vm63, %v48, 0
  %v68 = vsel %vm63, %v49, 0
  %v71 = vsel %vm63, %v50, 0
  %73 = vmatpush.msra.mxu0 0.0
  %74 = vmatpush.msra.mxu0 0.0
  %75 = vmatpush.msra.mxu0 0.0
  %76 = vmatpush.msra.mxu0 0.0
  %77 = vmatpush.msra.mxu0 0.0
  %78 = vmatpush.msra.mxu0 0.0
  %79 = vmatpush.msra.mxu0 0.0
  %80 = vmatpush.msra.mxu0 0.0
  %81 = vmatpush.msra.mxu0 %v65
  %82 = vmatpush.msra.mxu0 %v45
  %83 = vmatpush.msra.mxu0 %v42
  %84 = vmatpush.msra.mxu0 %v39
  %85 = vmatpush.msra.mxu0 %v36
  %86 = vmatpush.msra.mxu0 %v33
  %87 = vmatpush.msra.mxu0 %v30
  %88 = vmatpush.msra.mxu0 %v27
  %89 = vmatmul.f32.gmra.mxu0 %v61
  %v90 = vpop.f32.mrf.mxu0
  %v91 = vadd.f32 %v53, %v90
  %92 = vdwg.mxu0
  %93 = vmatpush.msra.mxu0 0.0
  %94 = vmatpush.msra.mxu0 0.0
  %95 = vmatpush.msra.mxu0 0.0
  %96 = vmatpush.msra.mxu0 0.0
  %97 = vmatpush.msra.mxu0 0.0
  %98 = vmatpush.msra.mxu0 0.0
  %99 = vmatpush.msra.mxu0 0.0
  %100 = vmatpush.msra.mxu0 0.0
  %101 = vmatpush.msra.mxu0 %v68
  %102 = vmatpush.msra.mxu0 %v46
  %103 = vmatpush.msra.mxu0 %v43
  %104 = vmatpush.msra.mxu0 %v40
  %105 = vmatpush.msra.mxu0 %v37
  %106 = vmatpush.msra.mxu0 %v34
  %107 = vmatpush.msra.mxu0 %v31
  %108 = vmatpush.msra.mxu0 %v28
  %109 = vmatmul.f32.gmra.mxu0 %v61
  %v110 = vpop.f32.mrf.mxu0
  %v111 = vadd.f32 %v54, %v110
  %112 = vdwg.mxu0
  %113 = vmatpush.msra.mxu0 0.0
  %114 = vmatpush.msra.mxu0 0.0
  %115 = vmatpush.msra.mxu0 0.0
  %116 = vmatpush.msra.mxu0 0.0
  %117 = vmatpush.msra.mxu0 0.0
  %118 = vmatpush.msra.mxu0 0.0
  %119 = vmatpush.msra.mxu0 0.0
  %120 = vmatpush.msra.mxu0 0.0
  %121 = vmatpush.msra.mxu0 %v71
  %122 = vmatpush.msra.mxu0 %v47
  %123 = vmatpush.msra.mxu0 %v44
  %124 = vmatpush.msra.mxu0 %v41
  %125 = vmatpush.msra.mxu0 %v38
  %126 = vmatpush.msra.mxu0 %v35
  %127 = vmatpush.msra.mxu0 %v32
  %128 = vmatpush.msra.mxu0 %v29
  %129 = vmatmul.f32.gmra.mxu0 %v61
  %v130 = vpop.f32.mrf.mxu0
  %v131 = vadd.f32 %v55, %v130
  %132 = vdwg.mxu0
  %v133 = vxor.u32 %v91, 2147483648
  %v134 = vxor.u32 %v111, 2147483648
  %v135 = vxor.u32 %v131, 2147483648
  %v136 = vmul.f32 %v133, 1.442695
  %v137 = vpow.pop %v136
  %v138 = vmul.f32 %v134, 1.442695
  %v139 = vpow.pop %v138
  %v140 = vmul.f32 %v135, 1.442695
  %v141 = vpow.pop %v140
  %v142 = vadd.f32 %v137, 1.0
  %v143 = vadd.f32 %v139, 1.0
  %v144 = vadd.f32 %v141, 1.0
  %v145 = vrcp.pop %v142
  %v146 = vmul.f32 %v142, %v145
  %v147 = vsub.f32 1.0, %v146
  %v148 = vmul.f32 %v145, %v147
  %v149 = vadd.f32 %v145, %v148
  %vm150 = vweird.f32 %v142
  %vm151 = vweird.f32 %v145
  %vm152 = vmor %vm150, %vm151
  %v153 = vsel %vm152, %v145, %v149
  %v154 = vand.u32 2147483647, %v142
  %vm155 = vcmp.eq.f32.partialorder %v154, 8.507059e+37
  %v156 = vand.u32 %v142, 2147483648
  %v157 = vor.u32 1.1754944e-38, %v156
  %v158 = vsel %vm155, %v157, %v153
  %v159 = vmul.f32 1.0, %v158
  %v160 = vrcp.pop %v143
  %v161 = vmul.f32 %v143, %v160
  %v162 = vsub.f32 1.0, %v161
  %v163 = vmul.f32 %v160, %v162
  %v164 = vadd.f32 %v160, %v163
  %vm165 = vweird.f32 %v143
  %vm166 = vweird.f32 %v160
  %vm167 = vmor %vm165, %vm166
  %v168 = vsel %vm167, %v160, %v164
  %v169 = vand.u32 2147483647, %v143
  %vm170 = vcmp.eq.f32.partialorder %v169, 8.507059e+37
  %v171 = vand.u32 %v143, 2147483648
  %v172 = vor.u32 1.1754944e-38, %v171
  %v173 = vsel %vm170, %v172, %v168
  %v174 = vmul.f32 1.0, %v173
  %v175 = vrcp.pop %v144
  %v176 = vmul.f32 %v144, %v175
  %v177 = vsub.f32 1.0, %v176
  %v178 = vmul.f32 %v175, %v177
  %v179 = vadd.f32 %v175, %v178
  %vm180 = vweird.f32 %v144
  %vm181 = vweird.f32 %v175
  %vm182 = vmor %vm180, %vm181
  %v183 = vsel %vm182, %v175, %v179
  %v184 = vand.u32 2147483647, %v144
  %vm185 = vcmp.eq.f32.partialorder %v184, 8.507059e+37
  %v186 = vand.u32 %v144, 2147483648
  %v187 = vor.u32 1.1754944e-38, %v186
  %v188 = vsel %vm185, %v187, %v183
  %v189 = vmul.f32 1.0, %v188
  %v190 = vld [vmem:[%s2] sm:$0xff]
  %v191 = vld [vmem:[%s2 + $0x8] sm:$0xff]
  %v192 = vld [vmem:[%s2 + $0x10] sm:$0xff]
  %v193 = vld [vmem:[%s2 + $0x18] sm:$0xff]
  %v194 = vld [vmem:[%s2 + $0x20] sm:$0xff]
  %v195 = vld [vmem:[%s2 + $0x28] sm:$0xff]
  %v196 = vld [vmem:[%s2 + $0x30] sm:$0xff]
  %v197 = vld [vmem:[%s2 + $0x38] sm:$0xff]
  %v198 = vld [vmem:[%s2 + $0x40] sm:$0xff]
  %v199 = vld [vmem:[%s2 + $0x48] sm:$0xff]
  %v200 = vld [vmem:[%s2 + $0x50] sm:$0xff]
  %v201 = vld [vmem:[%s2 + $0x58] sm:$0xff]
  %v202 = vld [vmem:[%s2 + $0x60] sm:$0xff]
  %v203 = vld [vmem:[%s2 + $0x68] sm:$0xff]
  %v204 = vld [vmem:[%s2 + $0x70] sm:$0xff]
  %v205 = vld [vmem:[%s2 + $0x78] sm:$0xff]
  %v206 = vld [vmem:[%s2 + $0x80] sm:$0xff]
  %v207 = vld [vmem:[%s2 + $0x88] sm:$0xff]
  %v208 = vld [vmem:[%s2 + $0x90] sm:$0xff]
  %v209 = vld [vmem:[%s2 + $0x98] sm:$0xff]
  %v210 = vld [vmem:[%s2 + $0xa0] sm:$0xff]
  %v211 = vld [vmem:[%s2 + $0xa8] sm:$0xff]
  %v212 = vld [vmem:[%s2 + $0xb0] sm:$0xff]
  %v213 = vld [vmem:[%s2 + $0xb8] sm:$0xff]
  %v214 = vld [vmem:[%s2 + $0xc0] sm:$0xff]
  %v215 = vld [vmem:[%s2 + $0xc8] sm:$0xff]
  %v216 = vld [vmem:[%s2 + $0xd0] sm:$0xff]
  %v217 = vld [vmem:[%s2 + $0xd8] sm:$0xff]
  %v218 = vld [vmem:[%s2 + $0xe0] sm:$0xff]
  %v219 = vld [vmem:[%s2 + $0xe8] sm:$0xff]
  %v220 = vld [vmem:[%s2 + $0xf0] sm:$0xff]
  %v221 = vld [vmem:[%s2 + $0xf8] sm:$0xff]
  %v222 = vld [vmem:[%s2 + $0x100] sm:$0xff]
  %v223 = vld [vmem:[%s2 + $0x108] sm:$0xff]
  %v224 = vld [vmem:[%s2 + $0x110] sm:$0xff]
  %v225 = vld [vmem:[%s2 + $0x118] sm:$0xff]
  %v226 = vld [vmem:[%s2 + $0x120] sm:$0xff]
  %v227 = vld [vmem:[%s2 + $0x128] sm:$0xff]
  %v228 = vld [vmem:[%s2 + $0x130] sm:$0xff]
  %v229 = vld [vmem:[%s2 + $0x138] sm:$0xff]
  %v230 = vld [vmem:[%s2 + $0x140] sm:$0xff]
  %v231 = vld [vmem:[%s2 + $0x148] sm:$0xff]
  %v232 = vld [vmem:[%s2 + $0x150] sm:$0xff]
  %v233 = vld [vmem:[%s2 + $0x158] sm:$0xff]
  %v234 = vld [vmem:[%s2 + $0x160] sm:$0xff]
  %v235 = vld [vmem:[%s2 + $0x168] sm:$0xff]
  %v236 = vld [vmem:[%s2 + $0x170] sm:$0xff]
  %v237 = vld [vmem:[%s2 + $0x178] sm:$0xff]
  %v238 = vld [vmem:[%s2 + $0x180] sm:$0xff]
  %v239 = vld [vmem:[%s2 + $0x188] sm:$0xff]
  %v240 = vld [vmem:[%s2 + $0x190] sm:$0xff]
  %v241 = vld [vmem:[%s2 + $0x198] sm:$0xff]
  %v242 = vld [vmem:[%s2 + $0x1a0] sm:$0xff]
  %v243 = vld [vmem:[%s2 + $0x1a8] sm:$0xff]
  %v244 = vld [vmem:[%s2 + $0x1b0] sm:$0xff]
  %v245 = vld [vmem:[%s2 + $0x1b8] sm:$0xff]
  %v246 = vld [vmem:[%s2 + $0x1c0] sm:$0xff]
  %v247 = vld [vmem:[%s2 + $0x1c8] sm:$0xff]
  %v248 = vld [vmem:[%s2 + $0x1d0] sm:$0xff]
  %v249 = vld [vmem:[%s2 + $0x1d8] sm:$0xff]
  %v250 = vld [vmem:[%s2 + $0x1e0] sm:$0xff]
  %v251 = vld [vmem:[%s2 + $0x1e8] sm:$0xff]
  %v252 = vld [vmem:[%s2 + $0x1f0] sm:$0xff]
  %v253 = vld [vmem:[%s2 + $0x1f8] sm:$0xff]
  %v254 = vld [vmem:[%s2 + $0x200] sm:$0xff]
  %v255 = vld [vmem:[%s2 + $0x208] sm:$0xff]
  %v256 = vld [vmem:[%s2 + $0x210] sm:$0xff]
  %v257 = vld [vmem:[%s2 + $0x218] sm:$0xff]
  %v258 = vld [vmem:[%s2 + $0x220] sm:$0xff]
  %v259 = vld [vmem:[%s2 + $0x228] sm:$0xff]
  %v260 = vld [vmem:[%s2 + $0x230] sm:$0xff]
  %v261 = vld [vmem:[%s2 + $0x238] sm:$0xff]
  %v262 = vld [vmem:[%s2 + $0x240] sm:$0xff]
  %v263 = vld [vmem:[%s2 + $0x248] sm:$0xff]
  %v264 = vld [vmem:[%s2 + $0x250] sm:$0xff]
  %v265 = vld [vmem:[%s2 + $0x258] sm:$0xff]
  %v266 = vld [vmem:[%s2 + $0x260] sm:$0xff]
  %v267 = vld [vmem:[%s2 + $0x268] sm:$0xff]
  %v268 = vld [vmem:[%s2 + $0x270] sm:$0xff]
  %v269 = vld [vmem:[%s2 + $0x278] sm:$0xff]
  %v270 = vld [vmem:[%s2 + $0x280] sm:$0xff]
  %v271 = vld [vmem:[%s2 + $0x288] sm:$0xff]
  %v272 = vld [vmem:[%s2 + $0x290] sm:$0xff]
  %v273 = vld [vmem:[%s2 + $0x298] sm:$0xff]
  %v274 = vld [vmem:[%s2 + $0x2a0] sm:$0xff]
  %v275 = vld [vmem:[%s2 + $0x2a8] sm:$0xff]
  %v276 = vld [vmem:[%s2 + $0x2b0] sm:$0xff]
  %v277 = vld [vmem:[%s2 + $0x2b8] sm:$0xff]
  %v278 = vld [vmem:[%s2 + $0x2c0] sm:$0xff]
  %v279 = vld [vmem:[%s2 + $0x2c8] sm:$0xff]
  %v280 = vld [vmem:[%s2 + $0x2d0] sm:$0xff]
  %v281 = vld [vmem:[%s2 + $0x2d8] sm:$0xff]
  %v282 = vld [vmem:[%s2 + $0x2e0] sm:$0xff]
  %v283 = vld [vmem:[%s2 + $0x2e8] sm:$0xff]
  %v284 = vld [vmem:[%s2 + $0x2f0] sm:$0xff]
  %v285 = vld [vmem:[%s2 + $0x2f8] sm:$0xff]
  %v286 = vld [vmem:[%s2 + $0x300] sm:$0xff]
  %v287 = vld [vmem:[%s2 + $0x308] sm:$0xff]
  %v288 = vld [vmem:[%s2 + $0x310] sm:$0xff]
  %v289 = vld [vmem:[%s2 + $0x318] sm:$0xff]
  %v290 = vld [vmem:[%s2 + $0x320] sm:$0xff]
  %v291 = vld [vmem:[%s2 + $0x328] sm:$0xff]
  %v292 = vld [vmem:[%s2 + $0x330] sm:$0xff]
  %v293 = vld [vmem:[%s2 + $0x338] sm:$0xff]
  %v294 = vld [vmem:[%s2 + $0x340] sm:$0xff]
  %v295 = vld [vmem:[%s2 + $0x348] sm:$0xff]
  %v296 = vld [vmem:[%s2 + $0x350] sm:$0xff]
  %v297 = vld [vmem:[%s2 + $0x358] sm:$0xff]
  %v298 = vld [vmem:[%s2 + $0x360] sm:$0xff]
  %v299 = vld [vmem:[%s2 + $0x368] sm:$0xff]
  %v300 = vld [vmem:[%s2 + $0x370] sm:$0xff]
  %v301 = vld [vmem:[%s2 + $0x378] sm:$0xff]
  %v302 = vld [vmem:[%s2 + $0x380] sm:$0xff]
  %v303 = vld [vmem:[%s2 + $0x388] sm:$0xff]
  %v304 = vld [vmem:[%s2 + $0x390] sm:$0xff]
  %v305 = vld [vmem:[%s2 + $0x398] sm:$0xff]
  %v306 = vld [vmem:[%s2 + $0x3a0] sm:$0xff]
  %v307 = vld [vmem:[%s2 + $0x3a8] sm:$0xff]
  %v308 = vld [vmem:[%s2 + $0x3b0] sm:$0xff]
  %v309 = vld [vmem:[%s2 + $0x3b8] sm:$0xff]
  %v310 = vld [vmem:[%s2 + $0x3c0] sm:$0xff]
  %v311 = vld [vmem:[%s2 + $0x3c8] sm:$0xff]
  %v312 = vld [vmem:[%s2 + $0x3d0] sm:$0xff]
  %v313 = vld [vmem:[%s2 + $0x3d8] sm:$0xff]
  %v314 = vld [vmem:[%s2 + $0x3e0] sm:$0xff]
  %v315 = vld [vmem:[%s2 + $0x3e8] sm:$0xff]
  %v316 = vld [vmem:[%s2 + $0x3f0] sm:$0xff]
  %v317 = vld [vmem:[%s2 + $0x3f8] sm:$0xff]
  %v318 = vld [vmem:[%s2 + $0x400] sm:$0xff]
  %v319 = vld [vmem:[%s2 + $0x408] sm:$0xff]
  %v320 = vld [vmem:[%s2 + $0x410] sm:$0xff]
  %v321 = vld [vmem:[%s2 + $0x418] sm:$0xff]
  %v322 = vld [vmem:[%s2 + $0x420] sm:$0xff]
  %v323 = vld [vmem:[%s2 + $0x428] sm:$0xff]
  %v324 = vld [vmem:[%s2 + $0x430] sm:$0xff]
  %v325 = vld [vmem:[%s2 + $0x438] sm:$0xff]
  %v326 = vld [vmem:[%s2 + $0x440] sm:$0xff]
  %v327 = vld [vmem:[%s2 + $0x448] sm:$0xff]
  %v328 = vld [vmem:[%s2 + $0x450] sm:$0xff]
  %v329 = vld [vmem:[%s2 + $0x458] sm:$0xff]
  %v330 = vld [vmem:[%s2 + $0x460] sm:$0xff]
  %v331 = vld [vmem:[%s2 + $0x468] sm:$0xff]
  %v332 = vld [vmem:[%s2 + $0x470] sm:$0xff]
  %v333 = vld [vmem:[%s2 + $0x478] sm:$0xff]
  %v334 = vld [vmem:[%s2 + $0x480] sm:$0xff]
  %v335 = vld [vmem:[%s2 + $0x488] sm:$0xff]
  %v336 = vld [vmem:[%s2 + $0x490] sm:$0xff]
  %v337 = vld [vmem:[%s2 + $0x498] sm:$0xff]
  %v338 = vld [vmem:[%s2 + $0x4a0] sm:$0xff]
  %v339 = vld [vmem:[%s2 + $0x4a8] sm:$0xff]
  %v340 = vld [vmem:[%s2 + $0x4b0] sm:$0xff]
  %v341 = vld [vmem:[%s2 + $0x4b8] sm:$0xff]
  %v342 = vld [vmem:[%s2 + $0x4c0] sm:$0xff]
  %v343 = vld [vmem:[%s2 + $0x4c8] sm:$0xff]
  %v344 = vld [vmem:[%s2 + $0x4d0] sm:$0xff]
  %v345 = vld [vmem:[%s2 + $0x4d8] sm:$0xff]
  %v346 = vld [vmem:[%s2 + $0x4e0] sm:$0xff]
  %v347 = vld [vmem:[%s2 + $0x4e8] sm:$0xff]
  %v348 = vld [vmem:[%s2 + $0x4f0] sm:$0xff]
  %v349 = vld [vmem:[%s2 + $0x4f8] sm:$0xff]
  %v350 = vld [vmem:[%s2 + $0x500] sm:$0xff]
  %v351 = vld [vmem:[%s2 + $0x508] sm:$0xff]
  %v352 = vld [vmem:[%s2 + $0x510] sm:$0xff]
  %v353 = vld [vmem:[%s2 + $0x518] sm:$0xff]
  %v354 = vld [vmem:[%s2 + $0x520] sm:$0xff]
  %v355 = vld [vmem:[%s2 + $0x528] sm:$0xff]
  %v356 = vld [vmem:[%s2 + $0x530] sm:$0xff]
  %v357 = vld [vmem:[%s2 + $0x538] sm:$0xff]
  %v358 = vld [vmem:[%s2 + $0x540] sm:$0xff]
  %v359 = vld [vmem:[%s2 + $0x548] sm:$0xff]
  %v360 = vld [vmem:[%s2 + $0x550] sm:$0xff]
  %v361 = vld [vmem:[%s2 + $0x558] sm:$0xff]
  %v362 = vld [vmem:[%s2 + $0x560] sm:$0xff]
  %v363 = vld [vmem:[%s2 + $0x568] sm:$0xff]
  %v364 = vld [vmem:[%s2 + $0x570] sm:$0xff]
  %v365 = vld [vmem:[%s2 + $0x578] sm:$0xff]
  %v366 = vld [vmem:[%s2 + $0x580] sm:$0xff]
  %v367 = vld [vmem:[%s2 + $0x588] sm:$0xff]
  %v368 = vld [vmem:[%s2 + $0x590] sm:$0xff]
  %v369 = vld [vmem:[%s2 + $0x598] sm:$0xff]
  %v370 = vld [vmem:[%s6 + $0x3] sm:$0xf]
  %v372 = vperm.slane %v370, 0
  %v373 = vperm.slane %v370, 1
  %v374 = vperm.slane %v370, 2
  %v375 = vperm.slane %v370, 3
  %vm380 = vcmask 850944
  %v382 = vsel %vm380, %v189, 0
  %384 = vmatpush.msra.mxu0 %v250
  %385 = vmatpush.msra.mxu0 %v246
  %386 = vmatpush.msra.mxu0 %v242
  %387 = vmatpush.msra.mxu0 %v238
  %388 = vmatpush.msra.mxu0 %v234
  %389 = vmatpush.msra.mxu0 %v230
  %390 = vmatpush.msra.mxu0 %v226
  %391 = vmatpush.msra.mxu0 %v222
  %392 = vmatpush.msra.mxu0 %v218
  %393 = vmatpush.msra.mxu0 %v214
  %394 = vmatpush.msra.mxu0 %v210
  %395 = vmatpush.msra.mxu0 %v206
  %396 = vmatpush.msra.mxu0 %v202
  %397 = vmatpush.msra.mxu0 %v198
  %398 = vmatpush.msra.mxu0 %v194
  %399 = vmatpush.msra.mxu0 %v190
  %400 = vmatmul.f32.gmra.mxu0 %v159
  %v401 = vpop.f32.mrf.mxu0
  %v402 = vadd.f32 %v372, %v401
  %403 = vdwg.mxu0
  %404 = vmatpush.msra.mxu0 %v314
  %405 = vmatpush.msra.mxu0 %v310
  %406 = vmatpush.msra.mxu0 %v306
  %407 = vmatpush.msra.mxu0 %v302
  %408 = vmatpush.msra.mxu0 %v298
  %409 = vmatpush.msra.mxu0 %v294
  %410 = vmatpush.msra.mxu0 %v290
  %411 = vmatpush.msra.mxu0 %v286
  %412 = vmatpush.msra.mxu0 %v282
  %413 = vmatpush.msra.mxu0 %v278
  %414 = vmatpush.msra.mxu0 %v274
  %415 = vmatpush.msra.mxu0 %v270
  %416 = vmatpush.msra.mxu0 %v266
  %417 = vmatpush.msra.mxu0 %v262
  %418 = vmatpush.msra.mxu0 %v258
  %419 = vmatpush.msra.mxu0 %v254
  %420 = vmatmul.f32.gmra.mxu0 %v174
  %v421 = vpop.f32.mrf.mxu0
  %v422 = vadd.f32 %v402, %v421
  %423 = vdwg.mxu0
  %424 = vmatpush.msra.mxu0 0.0
  %425 = vmatpush.msra.mxu0 0.0
  %426 = vmatpush.msra.mxu0 0.0
  %427 = vmatpush.msra.mxu0 %v366
  %428 = vmatpush.msra.mxu0 %v362
  %429 = vmatpush.msra.mxu0 %v358
  %430 = vmatpush.msra.mxu0 %v354
  %431 = vmatpush.msra.mxu0 %v350
  %432 = vmatpush.msra.mxu0 %v346
  %433 = vmatpush.msra.mxu0 %v342
  %434 = vmatpush.msra.mxu0 %v338
  %435 = vmatpush.msra.mxu0 %v334
  %436 = vmatpush.msra.mxu0 %v330
  %437 = vmatpush.msra.mxu0 %v326
  %438 = vmatpush.msra.mxu0 %v322
  %439 = vmatpush.msra.mxu0 %v318
  %440 = vmatmul.f32.gmra.mxu0 %v382
  %v441 = vpop.f32.mrf.mxu0
  %v442 = vadd.f32 %v422, %v441
  %443 = vdwg.mxu0
  %444 = vmatpush.msra.mxu0 %v251
  %445 = vmatpush.msra.mxu0 %v247
  %446 = vmatpush.msra.mxu0 %v243
  %447 = vmatpush.msra.mxu0 %v239
  %448 = vmatpush.msra.mxu0 %v235
  %449 = vmatpush.msra.mxu0 %v231
  %450 = vmatpush.msra.mxu0 %v227
  %451 = vmatpush.msra.mxu0 %v223
  %452 = vmatpush.msra.mxu0 %v219
  %453 = vmatpush.msra.mxu0 %v215
  %454 = vmatpush.msra.mxu0 %v211
  %455 = vmatpush.msra.mxu0 %v207
  %456 = vmatpush.msra.mxu0 %v203
  %457 = vmatpush.msra.mxu0 %v199
  %458 = vmatpush.msra.mxu0 %v195
  %459 = vmatpush.msra.mxu0 %v191
  %460 = vmatmul.f32.gmra.mxu0 %v159
  %v461 = vpop.f32.mrf.mxu0
  %v462 = vadd.f32 %v373, %v461
  %463 = vdwg.mxu0
  %464 = vmatpush.msra.mxu0 %v315
  %465 = vmatpush.msra.mxu0 %v311
  %466 = vmatpush.msra.mxu0 %v307
  %467 = vmatpush.msra.mxu0 %v303
  %468 = vmatpush.msra.mxu0 %v299
  %469 = vmatpush.msra.mxu0 %v295
  %470 = vmatpush.msra.mxu0 %v291
  %471 = vmatpush.msra.mxu0 %v287
  %472 = vmatpush.msra.mxu0 %v283
  %473 = vmatpush.msra.mxu0 %v279
  %474 = vmatpush.msra.mxu0 %v275
  %475 = vmatpush.msra.mxu0 %v271
  %476 = vmatpush.msra.mxu0 %v267
  %477 = vmatpush.msra.mxu0 %v263
  %478 = vmatpush.msra.mxu0 %v259
  %479 = vmatpush.msra.mxu0 %v255
  %480 = vmatmul.f32.gmra.mxu0 %v174
  %v481 = vpop.f32.mrf.mxu0
  %v482 = vadd.f32 %v462, %v481
  %483 = vdwg.mxu0
  %484 = vmatpush.msra.mxu0 0.0
  %485 = vmatpush.msra.mxu0 0.0
  %486 = vmatpush.msra.mxu0 0.0
  %487 = vmatpush.msra.mxu0 %v367
  %488 = vmatpush.msra.mxu0 %v363
  %489 = vmatpush.msra.mxu0 %v359
  %490 = vmatpush.msra.mxu0 %v355
  %491 = vmatpush.msra.mxu0 %v351
  %492 = vmatpush.msra.mxu0 %v347
  %493 = vmatpush.msra.mxu0 %v343
  %494 = vmatpush.msra.mxu0 %v339
  %495 = vmatpush.msra.mxu0 %v335
  %496 = vmatpush.msra.mxu0 %v331
  %497 = vmatpush.msra.mxu0 %v327
  %498 = vmatpush.msra.mxu0 %v323
  %499 = vmatpush.msra.mxu0 %v319
  %500 = vmatmul.f32.gmra.mxu0 %v382
  %v501 = vpop.f32.mrf.mxu0
  %v502 = vadd.f32 %v482, %v501
  %503 = vdwg.mxu0
  %504 = vmatpush.msra.mxu0 %v252
  %505 = vmatpush.msra.mxu0 %v248
  %506 = vmatpush.msra.mxu0 %v244
  %507 = vmatpush.msra.mxu0 %v240
  %508 = vmatpush.msra.mxu0 %v236
  %509 = vmatpush.msra.mxu0 %v232
  %510 = vmatpush.msra.mxu0 %v228
  %511 = vmatpush.msra.mxu0 %v224
  %512 = vmatpush.msra.mxu0 %v220
  %513 = vmatpush.msra.mxu0 %v216
  %514 = vmatpush.msra.mxu0 %v212
  %515 = vmatpush.msra.mxu0 %v208
  %516 = vmatpush.msra.mxu0 %v204
  %517 = vmatpush.msra.mxu0 %v200
  %518 = vmatpush.msra.mxu0 %v196
  %519 = vmatpush.msra.mxu0 %v192
  %520 = vmatmul.f32.gmra.mxu0 %v159
  %v521 = vpop.f32.mrf.mxu0
  %v522 = vadd.f32 %v374, %v521
  %523 = vdwg.mxu0
  %524 = vmatpush.msra.mxu0 %v316
  %525 = vmatpush.msra.mxu0 %v312
  %526 = vmatpush.msra.mxu0 %v308
  %527 = vmatpush.msra.mxu0 %v304
  %528 = vmatpush.msra.mxu0 %v300
  %529 = vmatpush.msra.mxu0 %v296
  %530 = vmatpush.msra.mxu0 %v292
  %531 = vmatpush.msra.mxu0 %v288
  %532 = vmatpush.msra.mxu0 %v284
  %533 = vmatpush.msra.mxu0 %v280
  %534 = vmatpush.msra.mxu0 %v276
  %535 = vmatpush.msra.mxu0 %v272
  %536 = vmatpush.msra.mxu0 %v268
  %537 = vmatpush.msra.mxu0 %v264
  %538 = vmatpush.msra.mxu0 %v260
  %539 = vmatpush.msra.mxu0 %v256
  %540 = vmatmul.f32.gmra.mxu0 %v174
  %v541 = vpop.f32.mrf.mxu0
  %v542 = vadd.f32 %v522, %v541
  %543 = vdwg.mxu0
  %544 = vmatpush.msra.mxu0 0.0
  %545 = vmatpush.msra.mxu0 0.0
  %546 = vmatpush.msra.mxu0 0.0
  %547 = vmatpush.msra.mxu0 %v368
  %548 = vmatpush.msra.mxu0 %v364
  %549 = vmatpush.msra.mxu0 %v360
  %550 = vmatpush.msra.mxu0 %v356
  %551 = vmatpush.msra.mxu0 %v352
  %552 = vmatpush.msra.mxu0 %v348
  %553 = vmatpush.msra.mxu0 %v344
  %554 = vmatpush.msra.mxu0 %v340
  %555 = vmatpush.msra.mxu0 %v336
  %556 = vmatpush.msra.mxu0 %v332
  %557 = vmatpush.msra.mxu0 %v328
  %558 = vmatpush.msra.mxu0 %v324
  %559 = vmatpush.msra.mxu0 %v320
  %560 = vmatmul.f32.gmra.mxu0 %v382
  %v561 = vpop.f32.mrf.mxu0
  %v562 = vadd.f32 %v542, %v561
  %563 = vdwg.mxu0
  %564 = vmatpush.msra.mxu0 %v253
  %565 = vmatpush.msra.mxu0 %v249
  %566 = vmatpush.msra.mxu0 %v245
  %567 = vmatpush.msra.mxu0 %v241
  %568 = vmatpush.msra.mxu0 %v237
  %569 = vmatpush.msra.mxu0 %v233
  %570 = vmatpush.msra.mxu0 %v229
  %571 = vmatpush.msra.mxu0 %v225
  %572 = vmatpush.msra.mxu0 %v221
  %573 = vmatpush.msra.mxu0 %v217
  %574 = vmatpush.msra.mxu0 %v213
  %575 = vmatpush.msra.mxu0 %v209
  %576 = vmatpush.msra.mxu0 %v205
  %577 = vmatpush.msra.mxu0 %v201
  %578 = vmatpush.msra.mxu0 %v197
  %579 = vmatpush.msra.mxu0 %v193
  %580 = vmatmul.f32.gmra.mxu0 %v159
  %v581 = vpop.f32.mrf.mxu0
  %v582 = vadd.f32 %v375, %v581
  %583 = vdwg.mxu0
  %584 = vmatpush.msra.mxu0 %v317
  %585 = vmatpush.msra.mxu0 %v313
  %586 = vmatpush.msra.mxu0 %v309
  %587 = vmatpush.msra.mxu0 %v305
  %588 = vmatpush.msra.mxu0 %v301
  %589 = vmatpush.msra.mxu0 %v297
  %590 = vmatpush.msra.mxu0 %v293
  %591 = vmatpush.msra.mxu0 %v289
  %592 = vmatpush.msra.mxu0 %v285
  %593 = vmatpush.msra.mxu0 %v281
  %594 = vmatpush.msra.mxu0 %v277
  %595 = vmatpush.msra.mxu0 %v273
  %596 = vmatpush.msra.mxu0 %v269
  %597 = vmatpush.msra.mxu0 %v265
  %598 = vmatpush.msra.mxu0 %v261
  %599 = vmatpush.msra.mxu0 %v257
  %600 = vmatmul.f32.gmra.mxu0 %v174
  %v601 = vpop.f32.mrf.mxu0
  %v602 = vadd.f32 %v582, %v601
  %603 = vdwg.mxu0
  %604 = vmatpush.msra.mxu0 0.0
  %605 = vmatpush.msra.mxu0 0.0
  %606 = vmatpush.msra.mxu0 0.0
  %607 = vmatpush.msra.mxu0 %v369
  %608 = vmatpush.msra.mxu0 %v365
  %609 = vmatpush.msra.mxu0 %v361
  %610 = vmatpush.msra.mxu0 %v357
  %611 = vmatpush.msra.mxu0 %v353
  %612 = vmatpush.msra.mxu0 %v349
  %613 = vmatpush.msra.mxu0 %v345
  %614 = vmatpush.msra.mxu0 %v341
  %615 = vmatpush.msra.mxu0 %v337
  %616 = vmatpush.msra.mxu0 %v333
  %617 = vmatpush.msra.mxu0 %v329
  %618 = vmatpush.msra.mxu0 %v325
  %619 = vmatpush.msra.mxu0 %v321
  %620 = vmatmul.f32.gmra.mxu0 %v382
  %v621 = vpop.f32.mrf.mxu0
  %v622 = vadd.f32 %v602, %v621
  %623 = vdwg.mxu0
  %v624 = vxor.u32 %v442, 2147483648
  %v625 = vxor.u32 %v502, 2147483648
  %v626 = vxor.u32 %v562, 2147483648
  %v627 = vxor.u32 %v622, 2147483648
  %v628 = vmul.f32 %v624, 1.442695
  %v629 = vpow.pop %v628
  %v630 = vmul.f32 %v625, 1.442695
  %v631 = vpow.pop %v630
  %v632 = vmul.f32 %v626, 1.442695
  %v633 = vpow.pop %v632
  %v634 = vmul.f32 %v627, 1.442695
  %v635 = vpow.pop %v634
  %v636 = vadd.f32 %v629, 1.0
  %v637 = vadd.f32 %v631, 1.0
  %v638 = vadd.f32 %v633, 1.0
  %v639 = vadd.f32 %v635, 1.0
  %v640 = vrcp.pop %v636
  %v641 = vmul.f32 %v636, %v640
  %v642 = vsub.f32 1.0, %v641
  %v643 = vmul.f32 %v640, %v642
  %v644 = vadd.f32 %v640, %v643
  %vm645 = vweird.f32 %v636
  %vm646 = vweird.f32 %v640
  %vm647 = vmor %vm645, %vm646
  %v648 = vsel %vm647, %v640, %v644
  %v649 = vand.u32 2147483647, %v636
  %vm650 = vcmp.eq.f32.partialorder %v649, 8.507059e+37
  %v651 = vand.u32 %v636, 2147483648
  %v652 = vor.u32 1.1754944e-38, %v651
  %v653 = vsel %vm650, %v652, %v648
  %v654 = vmul.f32 1.0, %v653
  %v655 = vrcp.pop %v637
  %v656 = vmul.f32 %v637, %v655
  %v657 = vsub.f32 1.0, %v656
  %v658 = vmul.f32 %v655, %v657
  %v659 = vadd.f32 %v655, %v658
  %vm660 = vweird.f32 %v637
  %vm661 = vweird.f32 %v655
  %vm662 = vmor %vm660, %vm661
  %v663 = vsel %vm662, %v655, %v659
  %v664 = vand.u32 2147483647, %v637
  %vm665 = vcmp.eq.f32.partialorder %v664, 8.507059e+37
  %v666 = vand.u32 %v637, 2147483648
  %v667 = vor.u32 1.1754944e-38, %v666
  %v668 = vsel %vm665, %v667, %v663
  %v669 = vmul.f32 1.0, %v668
  %v670 = vrcp.pop %v638
  %v671 = vmul.f32 %v638, %v670
  %v672 = vsub.f32 1.0, %v671
  %v673 = vmul.f32 %v670, %v672
  %v674 = vadd.f32 %v670, %v673
  %vm675 = vweird.f32 %v638
  %vm676 = vweird.f32 %v670
  %vm677 = vmor %vm675, %vm676
  %v678 = vsel %vm677, %v670, %v674
  %v679 = vand.u32 2147483647, %v638
  %vm680 = vcmp.eq.f32.partialorder %v679, 8.507059e+37
  %v681 = vand.u32 %v638, 2147483648
  %v682 = vor.u32 1.1754944e-38, %v681
  %v683 = vsel %vm680, %v682, %v678
  %v684 = vmul.f32 1.0, %v683
  %v685 = vrcp.pop %v639
  %v686 = vmul.f32 %v639, %v685
  %v687 = vsub.f32 1.0, %v686
  %v688 = vmul.f32 %v685, %v687
  %v689 = vadd.f32 %v685, %v688
  %vm690 = vweird.f32 %v639
  %vm691 = vweird.f32 %v685
  %vm692 = vmor %vm690, %vm691
  %v693 = vsel %vm692, %v685, %v689
  %v694 = vand.u32 2147483647, %v639
  %vm695 = vcmp.eq.f32.partialorder %v694, 8.507059e+37
  %v696 = vand.u32 %v639, 2147483648
  %v697 = vor.u32 1.1754944e-38, %v696
  %v698 = vsel %vm695, %v697, %v693
  %v699 = vmul.f32 1.0, %v698
  %v700 = vld [vmem:[%s3] sm:$0xff]
  %v701 = vld [vmem:[%s3 + $0x8] sm:$0xff]
  %v702 = vld [vmem:[%s3 + $0x10] sm:$0xff]
  %v703 = vld [vmem:[%s3 + $0x18] sm:$0xff]
  %v704 = vld [vmem:[%s3 + $0x20] sm:$0xff]
  %v705 = vld [vmem:[%s3 + $0x28] sm:$0xff]
  %v706 = vld [vmem:[%s3 + $0x30] sm:$0xff]
  %v707 = vld [vmem:[%s3 + $0x38] sm:$0xff]
  %v708 = vld [vmem:[%s3 + $0x40] sm:$0xff]
  %v709 = vld [vmem:[%s3 + $0x48] sm:$0xff]
  %v710 = vld [vmem:[%s3 + $0x50] sm:$0xff]
  %v711 = vld [vmem:[%s3 + $0x58] sm:$0xff]
  %v712 = vld [vmem:[%s3 + $0x60] sm:$0xff]
  %v713 = vld [vmem:[%s3 + $0x68] sm:$0xff]
  %v714 = vld [vmem:[%s3 + $0x70] sm:$0xff]
  %v715 = vld [vmem:[%s3 + $0x78] sm:$0xff]
  %v716 = vld [vmem:[%s3 + $0x80] sm:$0xff]
  %v717 = vld [vmem:[%s3 + $0x88] sm:$0xff]
  %v718 = vld [vmem:[%s3 + $0x90] sm:$0xff]
  %v719 = vld [vmem:[%s3 + $0x98] sm:$0xff]
  %v720 = vld [vmem:[%s3 + $0xa0] sm:$0xff]
  %v721 = vld [vmem:[%s3 + $0xa8] sm:$0xff]
  %v722 = vld [vmem:[%s3 + $0xb0] sm:$0xff]
  %v723 = vld [vmem:[%s3 + $0xb8] sm:$0xff]
  %v724 = vld [vmem:[%s3 + $0xc0] sm:$0xff]
  %v725 = vld [vmem:[%s3 + $0xc8] sm:$0xff]
  %v726 = vld [vmem:[%s3 + $0xd0] sm:$0xff]
  %v727 = vld [vmem:[%s3 + $0xd8] sm:$0xff]
  %v728 = vld [vmem:[%s3 + $0xe0] sm:$0xff]
  %v729 = vld [vmem:[%s3 + $0xe8] sm:$0xff]
  %v730 = vld [vmem:[%s3 + $0xf0] sm:$0xff]
  %v731 = vld [vmem:[%s3 + $0xf8] sm:$0xff]
  %v732 = vld [vmem:[%s3 + $0x100] sm:$0xff]
  %v733 = vld [vmem:[%s3 + $0x108] sm:$0xff]
  %v734 = vld [vmem:[%s3 + $0x110] sm:$0xff]
  %v735 = vld [vmem:[%s3 + $0x118] sm:$0xff]
  %v736 = vld [vmem:[%s3 + $0x120] sm:$0xff]
  %v737 = vld [vmem:[%s3 + $0x128] sm:$0xff]
  %v738 = vld [vmem:[%s3 + $0x130] sm:$0xff]
  %v739 = vld [vmem:[%s3 + $0x138] sm:$0xff]
  %v740 = vld [vmem:[%s3 + $0x140] sm:$0xff]
  %v741 = vld [vmem:[%s3 + $0x148] sm:$0xff]
  %v742 = vld [vmem:[%s3 + $0x150] sm:$0xff]
  %v743 = vld [vmem:[%s3 + $0x158] sm:$0xff]
  %v744 = vld [vmem:[%s3 + $0x160] sm:$0xff]
  %v745 = vld [vmem:[%s3 + $0x168] sm:$0xff]
  %v746 = vld [vmem:[%s3 + $0x170] sm:$0xff]
  %v747 = vld [vmem:[%s3 + $0x178] sm:$0xff]
  %v748 = vld [vmem:[%s3 + $0x180] sm:$0xff]
  %v749 = vld [vmem:[%s3 + $0x188] sm:$0xff]
  %v750 = vld [vmem:[%s3 + $0x190] sm:$0xff]
  %v751 = vld [vmem:[%s3 + $0x198] sm:$0xff]
  %v752 = vld [vmem:[%s6 + $0x7] sm:$0x1]
  %v754 = vperm.slane %v752, 0
  %vm756 = vcmask 261120
  %v758 = vsel %vm756, %v699, 0
  %760 = vmatpush.msra.mxu0 %v715
  %761 = vmatpush.msra.mxu0 %v714
  %762 = vmatpush.msra.mxu0 %v713
  %763 = vmatpush.msra.mxu0 %v712
  %764 = vmatpush.msra.mxu0 %v711
  %765 = vmatpush.msra.mxu0 %v710
  %766 = vmatpush.msra.mxu0 %v709
  %767 = vmatpush.msra.mxu0 %v708
  %768 = vmatpush.msra.mxu0 %v707
  %769 = vmatpush.msra.mxu0 %v706
  %770 = vmatpush.msra.mxu0 %v705
  %771 = vmatpush.msra.mxu0 %v704
  %772 = vmatpush.msra.mxu0 %v703
  %773 = vmatpush.msra.mxu0 %v702
  %774 = vmatpush.msra.mxu0 %v701
  %775 = vmatpush.msra.mxu0 %v700
  %776 = vmatmul.f32.gmra.mxu0 %v654
  %v777 = vpop.f32.mrf.mxu0
  %v778 = vadd.f32 %v754, %v777
  %779 = vdwg.mxu0
  %780 = vmatpush.msra.mxu0 %v731
  %781 = vmatpush.msra.mxu0 %v730
  %782 = vmatpush.msra.mxu0 %v729
  %783 = vmatpush.msra.mxu0 %v728
  %784 = vmatpush.msra.mxu0 %v727
  %785 = vmatpush.msra.mxu0 %v726
  %786 = vmatpush.msra.mxu0 %v725
  %787 = vmatpush.msra.mxu0 %v724
  %788 = vmatpush.msra.mxu0 %v723
  %789 = vmatpush.msra.mxu0 %v722
  %790 = vmatpush.msra.mxu0 %v721
  %791 = vmatpush.msra.mxu0 %v720
  %792 = vmatpush.msra.mxu0 %v719
  %793 = vmatpush.msra.mxu0 %v718
  %794 = vmatpush.msra.mxu0 %v717
  %795 = vmatpush.msra.mxu0 %v716
  %796 = vmatmul.f32.gmra.mxu0 %v669
  %v797 = vpop.f32.mrf.mxu0
  %v798 = vadd.f32 %v778, %v797
  %799 = vdwg.mxu0
  %800 = vmatpush.msra.mxu0 %v747
  %801 = vmatpush.msra.mxu0 %v746
  %802 = vmatpush.msra.mxu0 %v745
  %803 = vmatpush.msra.mxu0 %v744
  %804 = vmatpush.msra.mxu0 %v743
  %805 = vmatpush.msra.mxu0 %v742
  %806 = vmatpush.msra.mxu0 %v741
  %807 = vmatpush.msra.mxu0 %v740
  %808 = vmatpush.msra.mxu0 %v739
  %809 = vmatpush.msra.mxu0 %v738
  %810 = vmatpush.msra.mxu0 %v737
  %811 = vmatpush.msra.mxu0 %v736
  %812 = vmatpush.msra.mxu0 %v735
  %813 = vmatpush.msra.mxu0 %v734
  %814 = vmatpush.msra.mxu0 %v733
  %815 = vmatpush.msra.mxu0 %v732
  %816 = vmatmul.f32.gmra.mxu0 %v684
  %v817 = vpop.f32.mrf.mxu0
  %v818 = vadd.f32 %v798, %v817
  %819 = vdwg.mxu0
  %820 = vmatpush.msra.mxu0 0.0
  %821 = vmatpush.msra.mxu0 0.0
  %822 = vmatpush.msra.mxu0 0.0
  %823 = vmatpush.msra.mxu0 0.0
  %824 = vmatpush.msra.mxu0 0.0
  %825 = vmatpush.msra.mxu0 0.0
  %826 = vmatpush.msra.mxu0 0.0
  %827 = vmatpush.msra.mxu0 0.0
  %828 = vmatpush.msra.mxu0 0.0
  %829 = vmatpush.msra.mxu0 0.0
  %830 = vmatpush.msra.mxu0 0.0
  %831 = vmatpush.msra.mxu0 0.0
  %832 = vmatpush.msra.mxu0 %v751
  %833 = vmatpush.msra.mxu0 %v750
  %834 = vmatpush.msra.mxu0 %v749
  %835 = vmatpush.msra.mxu0 %v748
  %836 = vmatmul.f32.gmra.mxu0 %v758
  %v837 = vpop.f32.mrf.mxu0
  %v838 = vadd.f32 %v818, %v837
  %839 = vdwg.mxu0
  %v840 = vxor.u32 %v838, 2147483648
  %v841 = vmul.f32 %v840, 1.442695
  %v842 = vpow.pop %v841
  %v843 = vadd.f32 %v842, 1.0
  %v844 = vrcp.pop %v843
  %v845 = vmul.f32 %v843, %v844
  %v846 = vsub.f32 1.0, %v845
  %v847 = vmul.f32 %v844, %v846
  %v848 = vadd.f32 %v844, %v847
  %vm849 = vweird.f32 %v843
  %vm850 = vweird.f32 %v844
  %vm851 = vmor %vm849, %vm850
  %v852 = vsel %vm851, %v844, %v848
  %v853 = vand.u32 2147483647, %v843
  %vm854 = vcmp.eq.f32.partialorder %v853, 8.507059e+37
  %v855 = vand.u32 %v843, 2147483648
  %v856 = vor.u32 1.1754944e-38, %v855
  %v857 = vsel %vm854, %v856, %v852
  %v858 = vmul.f32 1.0, %v857
  %v859 = vld [vmem:[%s4] sm:$0xff]
  %v860 = vld [vmem:[%s4 + $0x8] sm:$0xff]
  %v861 = vld [vmem:[%s4 + $0x10] sm:$0xff]
  %v862 = vld [vmem:[%s4 + $0x18] sm:$0xff]
  %v863 = vld [vmem:[%s4 + $0x20] sm:$0xff]
  %v864 = vld [vmem:[%s4 + $0x28] sm:$0xff]
  %v865 = vld [vmem:[%s4 + $0x30] sm:$0xff]
  %v866 = vld [vmem:[%s4 + $0x38] sm:$0xff]
  %v867 = vld [vmem:[%s4 + $0x40] sm:$0xff]
  %v868 = vld [vmem:[%s4 + $0x48] sm:$0xff]
  %v869 = vld [vmem:[%s4 + $0x50] sm:$0xff]
  %v870 = vld [vmem:[%s4 + $0x58] sm:$0xff]
  %v871 = vld [vmem:[%s4 + $0x60] sm:$0xff]
  %v872 = vld [vmem:[%s4 + $0x68] sm:$0xff]
  %v873 = vld [vmem:[%s4 + $0x70] sm:$0xff]
  %v874 = vld [vmem:[%s6 + $0x8] sm:$0x1]
  %v876 = vperm.slane %v874, 0
  %vm878 = vcmask 982016
  %v880 = vsel %vm878, %v858, 0
  %882 = vmatpush.msra.mxu0 0.0
  %883 = vmatpush.msra.mxu0 %v873
  %884 = vmatpush.msra.mxu0 %v872
  %885 = vmatpush.msra.mxu0 %v871
  %886 = vmatpush.msra.mxu0 %v870
  %887 = vmatpush.msra.mxu0 %v869
  %888 = vmatpush.msra.mxu0 %v868
  %889 = vmatpush.msra.mxu0 %v867
  %890 = vmatpush.msra.mxu0 %v866
  %891 = vmatpush.msra.mxu0 %v865
  %892 = vmatpush.msra.mxu0 %v864
  %893 = vmatpush.msra.mxu0 %v863
  %894 = vmatpush.msra.mxu0 %v862
  %895 = vmatpush.msra.mxu0 %v861
  %896 = vmatpush.msra.mxu0 %v860
  %897 = vmatpush.msra.mxu0 %v859
  %898 = vmatmul.f32.gmra.mxu0 %v880
  %v899 = vpop.f32.mrf.mxu0
  %v900 = vadd.f32 %v876, %v899
  %901 = vdwg.mxu0
  %v902 = vxor.u32 %v900, 2147483648
  %v903 = vmul.f32 %v902, 1.442695
  %v904 = vpow.pop %v903
  %v905 = vadd.f32 %v904, 1.0
  %v906 = vrcp.pop %v905
  %v907 = vmul.f32 %v905, %v906
  %v908 = vsub.f32 1.0, %v907
  %v909 = vmul.f32 %v906, %v908
  %v910 = vadd.f32 %v906, %v909
  %vm911 = vweird.f32 %v905
  %vm912 = vweird.f32 %v906
  %vm913 = vmor %vm911, %vm912
  %v914 = vsel %vm913, %v906, %v910
  %v915 = vand.u32 2147483647, %v905
  %vm916 = vcmp.eq.f32.partialorder %v915, 8.507059e+37
  %v917 = vand.u32 %v905, 2147483648
  %v918 = vor.u32 1.1754944e-38, %v917
  %v919 = vsel %vm916, %v918, %v914
  %v920 = vmul.f32 1.0, %v919
  %v921 = vld [vmem:[%s5] sm:$0xff]
  %v922 = vld [vmem:[%s5 + $0x8] sm:$0xff]
  %v923 = vld [vmem:[%s5 + $0x10] sm:$0xff]
  %v924 = vld [vmem:[%s5 + $0x18] sm:$0xff]
  %v925 = vld [vmem:[%s5 + $0x20] sm:$0xff]
  %v926 = vld [vmem:[%s5 + $0x28] sm:$0xff]
  %v927 = vld [vmem:[%s5 + $0x30] sm:$0xff]
  %v928 = vld [vmem:[%s5 + $0x38] sm:$0xff]
  %v929 = vld [vmem:[%s5 + $0x40] sm:$0xff]
  %v930 = vld [vmem:[%s5 + $0x48] sm:$0xff]
  %v931 = vld [vmem:[%s5 + $0x50] sm:$0xf]
  %v932 = vld [vmem:[%s6 + $0x9] sm:$0x1]
  %v934 = vperm.slane %v932, 0
  %vm936 = vcmask 687104
  %v938 = vsel %vm936, %v920, 0
  %v941 = vsel %vm63, %v931, 0
  %943 = vmatpush.msra.mxu0 0.0
  %944 = vmatpush.msra.mxu0 0.0
  %945 = vmatpush.msra.mxu0 0.0
  %946 = vmatpush.msra.mxu0 0.0
  %947 = vmatpush.msra.mxu0 0.0
  %948 = vmatpush.msra.mxu0 %v941
  %949 = vmatpush.msra.mxu0 %v930
  %950 = vmatpush.msra.mxu0 %v929
  %951 = vmatpush.msra.mxu0 %v928
  %952 = vmatpush.msra.mxu0 %v927
  %953 = vmatpush.msra.mxu0 %v926
  %954 = vmatpush.msra.mxu0 %v925
  %955 = vmatpush.msra.mxu0 %v924
  %956 = vmatpush.msra.mxu0 %v923
  %957 = vmatpush.msra.mxu0 %v922
  %958 = vmatpush.msra.mxu0 %v921
  %959 = vmatmul.f32.gmra.mxu0 %v938
  %v960 = vpop.f32.mrf.mxu0
  %v961 = vadd.f32 %v934, %v960
  %962 = vdwg.mxu0
  %963 = vmax.xlane.f32.xlu0 %v961
  %v964 = vpop.xlane.xlu0 %963
  %v965 = vsub.f32 %v961, %v964
  %v966 = vmul.f32 %v965, 1.442695
  %v967 = vpow.pop %v966
  %968 = vadd.xlane.f32.xlu0 %v967
  %v969 = vpop.xlane.xlu0 %968
  %v970 = vrcp.pop %v969
  %v971 = vmul.f32 %v969, %v970
  %v972 = vsub.f32 1.0, %v971
  %v973 = vmul.f32 %v970, %v972
  %v974 = vadd.f32 %v970, %v973
  %vm975 = vweird.f32 %v969
  %vm976 = vweird.f32 %v970
  %vm977 = vmor %vm975, %vm976
  %v978 = vsel %vm977, %v970, %v974
  %v979 = vand.u32 2147483647, %v969
  %vm980 = vcmp.eq.f32.partialorder %v979, 8.507059e+37
  %v981 = vand.u32 %v969, 2147483648
  %v982 = vor.u32 1.1754944e-38, %v981
  %v983 = vsel %vm980, %v982, %v978
  %v984 = vmul.f32 %v967, %v983
  %985 = vst [vmem:[%s7] sm:$0xff] %v984
  // Predicated region
  $region30: #{simple_cnn_forward.1} parent=0 // pred_check
    _
  $region31: #{simple_cnn_forward.1} parent=0 // pred_check_branch
    %987 = sbr.rel (0) target = $region33
  $region32: #{simple_cnn_forward.1} parent=0 // pred_region
    _
  $region33: #{simple_cnn_forward.1} parent=0 // pred_fallthru
    _
  // Predicated region
  $region34: #{simple_cnn_forward.1} parent=0 // pred_check
    _
  $region35: #{simple_cnn_forward.1} parent=0 // pred_check_branch
    %989 = sbr.rel (0) target = $region37
  $region36: #{simple_cnn_forward.1} parent=0 // pred_region
    _
  $region37: #{simple_cnn_forward.1} parent=0 // pred_fallthru
    _

</llo_original>
